<compile_context>
chip_gen: v7x
topology: tpu7x:2x2x1
jax: 0.10.0
libtpu: 0.0.40
codegen_flags: <defaults>
</compile_context>

<pallas_src>
import jax
import jax.numpy as jnp
from jax.experimental import pallas as pl
from jax.experimental.pallas import tpu as pltpu


def _round_up(x, m):
    return (x + m - 1) // m * m


def critic_kernel(x_ref, w1_ref, b1_ref, w2_ref, b2_ref, w3_ref, b3_ref, o_ref):
    # Layer 1: Linear(state_dim -> hidden) + ReLU. bf16 MXU operands, f32 accumulate.
    h1 = jnp.dot(x_ref[...], w1_ref[...], preferred_element_type=jnp.float32)
    h1 = jnp.maximum(h1 + b1_ref[...], 0.0)                       # f32 VPU
    # Layer 2: Linear(hidden -> hidden) + ReLU. Cast activations to bf16 for the MXU.
    h2 = jnp.dot(h1.astype(w2_ref.dtype), w2_ref[...],
                 preferred_element_type=jnp.float32)
    h2 = jnp.maximum(h2 + b2_ref[...], 0.0)                       # f32 VPU
    # Layer 3: Linear(hidden -> 1) as VPU multiply + lane reduce — keeps the
    # narrow N=1 op off the MXU (which would waste 63/64 result lanes).
    v = jnp.sum(h2 * w3_ref[...], axis=-1, keepdims=True)         # (TILE_B, 1) f32
    o_ref[...] = (v + b3_ref[...]).astype(o_ref.dtype)


def critic_forward(state, params, *, max_tile_b=4096):
    """Pallas forward pass. state: (B, state_dim) float; returns (B, 1) float32."""
    w1, b1, w2, b2, w3, b3 = params
    B, state_dim = state.shape
    hidden = w1.shape[1]

    # Stream the large operands in bf16 (halves HBM traffic); biases and the tiny
    # value head stay f32 so bias/ReLU math is f32 everywhere.
    x = state.astype(jnp.bfloat16)
    w1b = w1.astype(jnp.bfloat16)
    w2b = w2.astype(jnp.bfloat16)
    w3r = jnp.reshape(w3, (1, hidden)).astype(jnp.float32)   # row layout for broadcast
    b3s = jnp.reshape(b3, (1, 1)).astype(jnp.float32)

    # Large batch tile (multiple of 16 for bf16 sublane packing), balanced across
    # tiles so padding stays small.
    padded = _round_up(B, 16)
    num_tiles = -(-padded // max(16, max_tile_b))
    tile_b = _round_up(-(-padded // num_tiles), 16)
    padded = tile_b * num_tiles
    if padded != B:
        x = jnp.pad(x, ((0, padded - B), (0, 0)))

    out = pl.pallas_call(
        critic_kernel,
        out_shape=jax.ShapeDtypeStruct((padded, 1), jnp.float32),
        grid=(num_tiles,),
        in_specs=[
            pl.BlockSpec((tile_b, state_dim), lambda i: (i, 0)),   # state: streamed
            pl.BlockSpec((state_dim, hidden), lambda i: (0, 0)),   # W1: resident
            pl.BlockSpec((1, hidden), lambda i: (0, 0)),           # b1: resident
            pl.BlockSpec((hidden, hidden), lambda i: (0, 0)),      # W2: resident
            pl.BlockSpec((1, hidden), lambda i: (0, 0)),           # b2: resident
            pl.BlockSpec((1, hidden), lambda i: (0, 0)),           # w3 row: resident
            pl.BlockSpec((1, 1), lambda i: (0, 0)),                # b3: resident
        ],
        out_specs=pl.BlockSpec((tile_b, 1), lambda i: (i, 0)),
        compiler_params=pltpu.CompilerParams(
            dimension_semantics=("parallel",),  # v7x: shard batch tiles across 2 TCs
        ),
    )(x, w1b, b1, w2b, b2, w3r, b3s)
    return out[:B]


def critic_reference(state, params):
    """Full-f32 reference matching the PyTorch module exactly."""
    w1, b1, w2, b2, w3, b3 = params
    h1 = jnp.maximum(state @ w1 + b1, 0.0)
    h2 = jnp.maximum(h1 @ w2 + b2, 0.0)
    return h2 @ w3 + b3


def critic_reference_mixed(state, params):
    """Reference emulating the kernel's bf16-operand / f32-accumulate precision."""
    w1, b1, w2, b2, w3, b3 = params
    up = lambda a: a.astype(jnp.bfloat16).astype(jnp.float32)
    h1 = jnp.maximum(up(state) @ up(w1) + b1, 0.0)
    h2 = jnp.maximum(up(h1) @ up(w2) + b2, 0.0)
    return h2 @ w3 + b3


def critic_value(state, params, *, min_pallas_batch=512):
    """Call-site policy: at tiny batches the pallas_call launch overhead dominates,
    so let XLA fuse the three matmuls; use the Pallas kernel for large batches."""
    if state.shape[0] < min_pallas_batch:
        return critic_reference(state, params).astype(jnp.float32)
    return critic_forward(state, params)


def init_params(key, state_dim, hidden_dim=64):
    # PyTorch-style uniform(-1/sqrt(fan_in), 1/sqrt(fan_in)); weights stored [in, out].
    ks = jax.random.split(key, 6)

    def lin(kw, kb, fan_in, fan_out):
        bound = 1.0 / jnp.sqrt(fan_in)
        w = jax.random.uniform(kw, (fan_in, fan_out), jnp.float32, -bound, bound)
        b = jax.random.uniform(kb, (1, fan_out), jnp.float32, -bound, bound)
        return w, b

    w1, b1 = lin(ks[0], ks[1], state_dim, hidden_dim)
    w2, b2 = lin(ks[2], ks[3], hidden_dim, hidden_dim)
    w3, b3 = lin(ks[4], ks[5], hidden_dim, 1)
    return (w1, b1, w2, b2, w3, b3)


if __name__ == "__main__":
    key = jax.random.PRNGKey(0)
    k_param, k_state1, k_state2 = jax.random.split(key, 3)

    state_dim = 32
    hidden_dim = 64
    params = init_params(k_param, state_dim, hidden_dim)

    # Small batch (single tile, padded 8 -> 16 internally).
    state_small = jax.random.normal(k_state1, (8, state_dim), jnp.float32)
    v_small = jax.block_until_ready(critic_forward(state_small, params))

    # Larger, non-multiple batch with a small tile cap: exercises the multi-tile
    # grid, resident weights across grid steps, and padding slice-off.
    state_big = jax.random.normal(k_state2, (300, state_dim), jnp.float32)
    v_big = jax.block_until_ready(critic_forward(state_big, params, max_tile_b=128))

    for state, v in ((state_small, v_small), (state_big, v_big)):
        assert v.shape == (state.shape[0], 1)
        ref_mixed = critic_reference_mixed(state, params)
        assert jnp.allclose(v, ref_mixed, atol=1e-3, rtol=1e-3), \
            float(jnp.max(jnp.abs(v - ref_mixed)))
        ref_f32 = critic_reference(state, params)
        assert jnp.allclose(v, ref_f32, atol=1e-1, rtol=1e-1), \
            float(jnp.max(jnp.abs(v - ref_f32)))

    print("KERNEL_OK")
</pallas_src>

<mosaic_0001>
module attributes {stable_mosaic.version = 11 : i64} {
  func.func @critic_kernel(%arg0: i32, %arg1: memref<16x32xbf16, #tpu.memory_space<vmem>>, %arg2: memref<32x64xbf16, #tpu.memory_space<vmem>>, %arg3: memref<1x64xf32, #tpu.memory_space<vmem>>, %arg4: memref<64x64xbf16, #tpu.memory_space<vmem>>, %arg5: memref<1x64xf32, #tpu.memory_space<vmem>>, %arg6: memref<1x64xf32, #tpu.memory_space<vmem>>, %arg7: memref<1x1xf32, #tpu.memory_space<vmem>>, %arg8: memref<16x1xf32, #tpu.memory_space<vmem>>) attributes {dimension_semantics = [#tpu.dimension_semantics<parallel>], iteration_bounds = array<i64: 1>, scalar_prefetch = 0 : i64, scratch_operands = 0 : i64, tpu.core_type = #tpu.core_type<tc>, window_params = [{transform_indices = @transform_0, window_bounds = array<i64: 16, 32>}, {pipeline_mode = #tpu.pipeline_mode<synchronous>, transform_indices = @transform_1, window_bounds = array<i64: 32, 64>}, {pipeline_mode = #tpu.pipeline_mode<synchronous>, transform_indices = @transform_2, window_bounds = array<i64: 1, 64>}, {pipeline_mode = #tpu.pipeline_mode<synchronous>, transform_indices = @transform_3, window_bounds = array<i64: 64, 64>}, {pipeline_mode = #tpu.pipeline_mode<synchronous>, transform_indices = @transform_4, window_bounds = array<i64: 1, 64>}, {pipeline_mode = #tpu.pipeline_mode<synchronous>, transform_indices = @transform_5, window_bounds = array<i64: 1, 64>}, {pipeline_mode = #tpu.pipeline_mode<synchronous>, transform_indices = @transform_6, window_bounds = array<i64: 1, 1>}, {transform_indices = @transform_7, window_bounds = array<i64: 16, 1>}]} {
    %c0 = arith.constant 0 : index
    %c0_0 = arith.constant 0 : index
    %0 = vector.load %arg1[%c0, %c0_0] : memref<16x32xbf16, #tpu.memory_space<vmem>>, vector<16x32xbf16>
    %c0_1 = arith.constant 0 : index
    %c0_2 = arith.constant 0 : index
    %1 = vector.load %arg2[%c0_1, %c0_2] : memref<32x64xbf16, #tpu.memory_space<vmem>>, vector<32x64xbf16>
    %cst = arith.constant dense<0.000000e+00> : vector<16x64xf32>
    %2 = tpu.matmul %0, %1, %cst {dimension_numbers = #tpu.dot_dimension_numbers<[1], [0], [0], [1], [0, 0, 1, 1], [], []>} : vector<16x32xbf16>, vector<32x64xbf16>, vector<16x64xf32> -> vector<16x64xf32>
    %c0_3 = arith.constant 0 : index
    %c0_4 = arith.constant 0 : index
    %3 = vector.load %arg3[%c0_3, %c0_4] : memref<1x64xf32, #tpu.memory_space<vmem>>, vector<1x64xf32>
    %4 = vector.broadcast %3 : vector<1x64xf32> to vector<16x64xf32>
    %5 = arith.addf %2, %4 : vector<16x64xf32>
    %cst_5 = arith.constant 0.000000e+00 : f32
    %6 = vector.broadcast %cst_5 : f32 to vector<16x64xf32>
    %7 = arith.maximumf %5, %6 : vector<16x64xf32>
    %8 = arith.truncf %7 : vector<16x64xf32> to vector<16x64xbf16>
    %c0_6 = arith.constant 0 : index
    %c0_7 = arith.constant 0 : index
    %9 = vector.load %arg4[%c0_6, %c0_7] : memref<64x64xbf16, #tpu.memory_space<vmem>>, vector<64x64xbf16>
    %cst_8 = arith.constant dense<0.000000e+00> : vector<16x64xf32>
    %10 = tpu.matmul %8, %9, %cst_8 {dimension_numbers = #tpu.dot_dimension_numbers<[1], [0], [0], [1], [0, 0, 1, 1], [], []>} : vector<16x64xbf16>, vector<64x64xbf16>, vector<16x64xf32> -> vector<16x64xf32>
    %c0_9 = arith.constant 0 : index
    %c0_10 = arith.constant 0 : index
    %11 = vector.load %arg5[%c0_9, %c0_10] : memref<1x64xf32, #tpu.memory_space<vmem>>, vector<1x64xf32>
    %12 = vector.broadcast %11 : vector<1x64xf32> to vector<16x64xf32>
    %13 = arith.addf %10, %12 : vector<16x64xf32>
    %cst_11 = arith.constant 0.000000e+00 : f32
    %14 = vector.broadcast %cst_11 : f32 to vector<16x64xf32>
    %15 = arith.maximumf %13, %14 : vector<16x64xf32>
    %c0_12 = arith.constant 0 : index
    %c0_13 = arith.constant 0 : index
    %16 = vector.load %arg6[%c0_12, %c0_13] : memref<1x64xf32, #tpu.memory_space<vmem>>, vector<1x64xf32>
    %17 = vector.broadcast %16 : vector<1x64xf32> to vector<16x64xf32>
    %18 = arith.mulf %15, %17 : vector<16x64xf32>
    %cst_14 = arith.constant dense<0.000000e+00> : vector<16xf32>
    %19 = vector.multi_reduction <add>, %18, %cst_14 [1] : vector<16x64xf32> to vector<16xf32>
    %20 = vector.shape_cast %19 : vector<16xf32> to vector<16x1xf32>
    %c0_15 = arith.constant 0 : index
    %c0_16 = arith.constant 0 : index
    %21 = vector.load %arg7[%c0_15, %c0_16] : memref<1x1xf32, #tpu.memory_space<vmem>>, vector<1x1xf32>
    %22 = vector.broadcast %21 : vector<1x1xf32> to vector<16x1xf32>
    %23 = arith.addf %20, %22 : vector<16x1xf32>
    %c0_17 = arith.constant 0 : index
    %c0_18 = arith.constant 0 : index
    %24 = vector.load %arg8[%c0_17, %c0_18] : memref<16x1xf32, #tpu.memory_space<vmem>>, vector<16x1xf32>
    tpu.vector_store %arg8[%c0_17, %c0_18], %23 {strides = array<i32>} : memref<16x1xf32, #tpu.memory_space<vmem>>, vector<16x1xf32>,
    return
  }
  func.func @transform_0(%arg0: i32) -> (i32, i32) {
    %c0_i32 = arith.constant 0 : i32
    %c0_i32_0 = arith.constant 0 : i32
    return %arg0, %c0_i32 : i32, i32
  }
  func.func @transform_1(%arg0: i32) -> (i32, i32) {
    %c0_i32 = arith.constant 0 : i32
    %c0_i32_0 = arith.constant 0 : i32
    %c0_i32_1 = arith.constant 0 : i32
    return %c0_i32, %c0_i32_0 : i32, i32
  }
  func.func @transform_2(%arg0: i32) -> (i32, i32) {
    %c0_i32 = arith.constant 0 : i32
    %c0_i32_0 = arith.constant 0 : i32
    %c0_i32_1 = arith.constant 0 : i32
    return %c0_i32, %c0_i32_0 : i32, i32
  }
  func.func @transform_3(%arg0: i32) -> (i32, i32) {
    %c0_i32 = arith.constant 0 : i32
    %c0_i32_0 = arith.constant 0 : i32
    %c0_i32_1 = arith.constant 0 : i32
    return %c0_i32, %c0_i32_0 : i32, i32
  }
  func.func @transform_4(%arg0: i32) -> (i32, i32) {
    %c0_i32 = arith.constant 0 : i32
    %c0_i32_0 = arith.constant 0 : i32
    %c0_i32_1 = arith.constant 0 : i32
    return %c0_i32, %c0_i32_0 : i32, i32
  }
  func.func @transform_5(%arg0: i32) -> (i32, i32) {
    %c0_i32 = arith.constant 0 : i32
    %c0_i32_0 = arith.constant 0 : i32
    %c0_i32_1 = arith.constant 0 : i32
    return %c0_i32, %c0_i32_0 : i32, i32
  }
  func.func @transform_6(%arg0: i32) -> (i32, i32) {
    %c0_i32 = arith.constant 0 : i32
    %c0_i32_0 = arith.constant 0 : i32
    %c0_i32_1 = arith.constant 0 : i32
    return %c0_i32, %c0_i32_0 : i32, i32
  }
  func.func @transform_7(%arg0: i32) -> (i32, i32) {
    %c0_i32 = arith.constant 0 : i32
    %c0_i32_0 = arith.constant 0 : i32
    return %arg0, %c0_i32 : i32, i32
  }
}

</mosaic_0001>

<llo_original>
// kernel: tpu_custom_call.1
$region0: #{tpu_custom_call.1}
  #allocation0 [shape = 'u32[]', space=smem, size = 0x4, offset = 0x4, fixed_abs, tag = 'smem constant byte address 0x4 - core index']
  #allocation1 [shape = 'u32[144,128]{1,0:T(1,128)}', space=vmem, size = 0x12000, scoped, tag = 'internal scratch']
  #allocation2 [shape = 'f32[1,1]{1,0:T(1,128)S(1)}', space=vmem, size = 0x200, scoped, tag = 'scoped memory for tpu_custom_call.1']
  %s0 = inlined_call_operand.hbm [shape: bf16[16,32], index: 0, kind: input, shape index: {}]
  %s1 = inlined_call_operand.hbm [shape: bf16[32,64], index: 1, kind: input, shape index: {}]
  %s2 = inlined_call_operand.vmem [shape: f32[1,64], index: 2, kind: input, shape index: {}]
  %s3 = inlined_call_operand.hbm [shape: bf16[64,64], index: 3, kind: input, shape index: {}]
  %s4 = inlined_call_operand.vmem [shape: f32[1,64], index: 4, kind: input, shape index: {}]
  %s5 = inlined_call_operand.vmem [shape: f32[1,64], index: 5, kind: input, shape index: {}]
  %s6 = inlined_call_operand.<no memory space> [shape: f32[1,1], index: 6, kind: input, shape index: {}]
  %s7 = inlined_call_operand.vmem [shape: f32[16,1], index: 7, kind: output, shape index: {}]
  %s8 = sld [smem:[#allocation0]]
  $region50: #{tpu_custom_call.1} parent=0
    _
  %s10 = ssub.s32 1, %s8
  %s11 = scalar_select 0, %s10, %s8
  %v12 = vstv %s6
  %13 = vst [vmem:[#allocation2] sm:$0x1] %v12
  $region1: #{tpu_custom_call.1} parent=0
    #allocation3 [shape = 'u8[4096]{0}', space=vmem, size = 0x1000, scoped, tag = 'input window, operand 0, single buffered']
    #allocation4 [shape = 's32[1]{0}', space=sflag, size = 0x4, scoped, tag = 'scoped memory for tpu_custom_call.1']
    #allocation5 [shape = 'u8[8192]{0}', space=vmem, size = 0x2000, scoped, tag = 'input window, operand 1, single buffered']
    #allocation6 [shape = 's32[1]{0}', space=sflag, size = 0x4, scoped, tag = 'scoped memory for tpu_custom_call.1']
    #allocation7 [shape = 'u8[16384]{0}', space=vmem, size = 0x4000, scoped, tag = 'input window, operand 3, single buffered']
    %14 = vsyncpa [#allocation4], 0
    %15 = vsyncpa [#allocation6], 0
    // Predicated region
    $region2: #{tpu_custom_call.1} parent=1 // pred_check
      _
    $region3: #{tpu_custom_call.1} parent=1 // pred_check_branch
      %17 = sbr.rel (0) target = $region5
    $region4: #{tpu_custom_call.1} parent=1 // pred_region
      %s19 = ssub.s32 128, 128
      %20 = vsyncadd [#allocation4], %s19
      %s21 = sshll.u32 [#allocation3], 4
      %s22 = int_to_ptr.vmem [resolvable:$true] %s21
      %27 = dma.hbm_to_vmem [thread:$0]  %s0, 128, %s22, [#allocation4], 64, 64, 4
    $region5: #{tpu_custom_call.1} parent=1 // pred_fallthru
      _
    // Predicated region
    $region6: #{tpu_custom_call.1} parent=1 // pred_check
      _
    $region7: #{tpu_custom_call.1} parent=1 // pred_check_branch
      %29 = sbr.rel (0) target = $region9
    $region8: #{tpu_custom_call.1} parent=1 // pred_region
      %s31 = ssub.s32 256, 256
      %32 = vsyncadd [#allocation6], %s31
      %s33 = sshll.u32 [#allocation5], 4
      %s34 = int_to_ptr.vmem [resolvable:$true] %s33
      %39 = dma.hbm_to_vmem [thread:$0]  %s1, 256, %s34, [#allocation6], 64, 64, 4
    $region9: #{tpu_custom_call.1} parent=1 // pred_fallthru
      _
    // Predicated region
    $region10: #{tpu_custom_call.1} parent=1 // pred_check
      _
    $region11: #{tpu_custom_call.1} parent=1 // pred_check_branch
      %41 = sbr.rel (0) target = $region13
    $region12: #{tpu_custom_call.1} parent=1 // pred_region
      _
    $region13: #{tpu_custom_call.1} parent=1 // pred_fallthru
      _
    // Predicated region
    $region14: #{tpu_custom_call.1} parent=1 // pred_check
      _
    $region15: #{tpu_custom_call.1} parent=1 // pred_check_branch
      %43 = sbr.rel (0) target = $region17
    $region16: #{tpu_custom_call.1} parent=1 // pred_region
      %s45 = ssub.s32 512, 512
      %46 = vsyncadd [#allocation6], %s45
      %s47 = sshll.u32 [#allocation7], 4
      %s48 = int_to_ptr.vmem [resolvable:$true] %s47
      %53 = dma.hbm_to_vmem [thread:$0]  %s3, 512, %s48, [#allocation6], 64, 64, 4
    $region17: #{tpu_custom_call.1} parent=1 // pred_fallthru
      _
    // Predicated region
    $region18: #{tpu_custom_call.1} parent=1 // pred_check
      _
    $region19: #{tpu_custom_call.1} parent=1 // pred_check_branch
      %55 = sbr.rel (0) target = $region21
    $region20: #{tpu_custom_call.1} parent=1 // pred_region
      _
    $region21: #{tpu_custom_call.1} parent=1 // pred_fallthru
      _
    // Predicated region
    $region22: #{tpu_custom_call.1} parent=1 // pred_check
      _
    $region23: #{tpu_custom_call.1} parent=1 // pred_check_branch
      %57 = sbr.rel (0) target = $region25
    $region24: #{tpu_custom_call.1} parent=1 // pred_region
      _
    $region25: #{tpu_custom_call.1} parent=1 // pred_fallthru
      _
    // Predicated region
    $region26: #{tpu_custom_call.1} parent=1 // pred_check
      _
    $region27: #{tpu_custom_call.1} parent=1 // pred_check_branch
      %59 = sbr.rel (0) target = $region29
    $region28: #{tpu_custom_call.1} parent=1 // pred_region
      _
    $region29: #{tpu_custom_call.1} parent=1 // pred_fallthru
      _
    // Predicated region
    $region30: #{tpu_custom_call.1} parent=1 // pred_check
      _
    $region31: #{tpu_custom_call.1} parent=1 // pred_check_branch
      %61 = sbr.rel (0) target = $region33
    $region32: #{tpu_custom_call.1} parent=1 // pred_region
      %62 = dma.done [#allocation4], 128
    $region33: #{tpu_custom_call.1} parent=1 // pred_fallthru
      _
    // Predicated region
    $region34: #{tpu_custom_call.1} parent=1 // pred_check
      _
    $region35: #{tpu_custom_call.1} parent=1 // pred_check_branch
      %64 = sbr.rel (0) target = $region37
    $region36: #{tpu_custom_call.1} parent=1 // pred_region
      %65 = dma.done [#allocation6], 256
    $region37: #{tpu_custom_call.1} parent=1 // pred_fallthru
      _
    // Predicated region
    $region38: #{tpu_custom_call.1} parent=1 // pred_check
      _
    $region39: #{tpu_custom_call.1} parent=1 // pred_check_branch
      %67 = sbr.rel (0) target = $region41
    $region40: #{tpu_custom_call.1} parent=1 // pred_region
      %68 = dma.done [#allocation6], 512
    $region41: #{tpu_custom_call.1} parent=1 // pred_fallthru
      _
    %v70 = vld [vmem:[#allocation3] sm:$0xf]
    %v71 = vld [vmem:[#allocation3 + $0x4] sm:$0xf]
    %v72 = vld [vmem:[#allocation5] sm:$0xf]
    %v73 = vld [vmem:[#allocation5 + $0x4] sm:$0xf]
    %v74 = vld [vmem:[#allocation5 + $0x8] sm:$0xf]
    %v75 = vld [vmem:[#allocation5 + $0xc] sm:$0xf]
    %v76 = vld [vmem:[%s2] sm:$0x1]
    %v78 = vlaneseq
    %v79 = vshrl.u32 %v78, 7
    %v80 = vsub.s32 0, %v79
    %v81 = vrot.slane %v76, %v80
    %v85 = vunpack.c.l.b16 %v70
    %v86 = vunpack.c.l.b16 %v71
    %v87 = vpack.c.b16 %v86, %v85
    %v92 = vunpack.c.l.b16 %v72
    %v93 = vunpack.c.l.b16 %v73
    %v94 = vunpack.c.l.b16 %v74
    %v95 = vunpack.c.l.b16 %v75
    %v96 = vpack.c.b16 %v93, %v92
    %v97 = vpack.c.b16 %v95, %v94
    %vm100 = vcmask 261120
    %v102 = vsel %vm100, %v87, 0
    %104 = vmatprep.subr.bf16.mxu0 0
    %105 = vmatpush1.bf16.msra.mxu0 %v96
    %106 = vmatprep.subr.bf16.mxu0 0
    %107 = vmatpush1.bf16.msra.mxu0 %v97
    %108 = vmatprep.subr.bf16.mxu0 0
    %109 = vmatpush1.bf16.msra.mxu0 0
    %110 = vmatprep.subr.bf16.mxu0 0
    %111 = vmatpush1.bf16.msra.mxu0 0
    %112 = vmatprep.subr.bf16.mxu0 0
    %113 = vmatpush1.bf16.msra.mxu0 0
    %114 = vmatprep.subr.bf16.mxu0 0
    %115 = vmatpush1.bf16.msra.mxu0 0
    %116 = vmatprep.subr.bf16.mxu0 0
    %117 = vmatpush1.bf16.msra.mxu0 0
    %118 = vmatprep.subr.bf16.mxu0 0
    %119 = vmatpush1.bf16.msra.mxu0 0
    %120 = vmatprep.subr.bf16.mxu0 0
    %121 = vmatpush1.bf16.msra.mxu0 0
    %122 = vmatprep.subr.bf16.mxu0 0
    %123 = vmatpush1.bf16.msra.mxu0 0
    %124 = vmatprep.subr.bf16.mxu0 0
    %125 = vmatpush1.bf16.msra.mxu0 0
    %126 = vmatprep.subr.bf16.mxu0 0
    %127 = vmatpush1.bf16.msra.mxu0 0
    %128 = vmatprep.subr.bf16.mxu0 0
    %129 = vmatpush1.bf16.msra.mxu0 0
    %130 = vmatprep.subr.bf16.mxu0 0
    %131 = vmatpush1.bf16.msra.mxu0 0
    %132 = vmatprep.subr.bf16.mxu0 0
    %133 = vmatpush1.bf16.msra.mxu0 0
    %134 = vmatprep.subr.bf16.mxu0 0
    %135 = vmatpush1.bf16.msra.mxu0 0
    %136 = vmatprep.mubr.bf16.mxu0 0
    %137 = vmatmul.mubr.bf16.gmra.mrb[0].mxu0 %v102
    %v138 = vpop.f32.mrb[0].mxu0
    %v139 = vadd.f32 %v81, %v138
    %v140 = vpop.f32.mrb[0].mxu0
    %v141 = vpop.f32.mrb[0].mxu0
    %v142 = vadd.f32 %v81, %v141
    %v143 = vpop.f32.mrb[0].mxu0
    %144 = vdwg.mxu0
    %v145 = vmax.f32 %v139, 0.0
    %v146 = vmax.f32 %v142, 0.0
    %v147 = vpack.c.bf16 %v146, %v145
    %v148 = vld [vmem:[#allocation7] sm:$0xf]
    %v149 = vld [vmem:[#allocation7 + $0x4] sm:$0xf]
    %v150 = vld [vmem:[#allocation7 + $0x8] sm:$0xf]
    %v151 = vld [vmem:[#allocation7 + $0xc] sm:$0xf]
    %v152 = vld [vmem:[#allocation7 + $0x10] sm:$0xf]
    %v153 = vld [vmem:[#allocation7 + $0x14] sm:$0xf]
    %v154 = vld [vmem:[#allocation7 + $0x18] sm:$0xf]
    %v155 = vld [vmem:[#allocation7 + $0x1c] sm:$0xf]
    %v156 = vld [vmem:[%s4] sm:$0x1]
    %v158 = vlaneseq
    %v159 = vshrl.u32 %v158, 7
    %v160 = vsub.s32 0, %v159
    %v161 = vrot.slane %v156, %v160
    %v171 = vunpack.c.l.b16 %v148
    %v172 = vunpack.c.l.b16 %v149
    %v173 = vunpack.c.l.b16 %v150
    %v174 = vunpack.c.l.b16 %v151
    %v175 = vunpack.c.l.b16 %v152
    %v176 = vunpack.c.l.b16 %v153
    %v177 = vunpack.c.l.b16 %v154
    %v178 = vunpack.c.l.b16 %v155
    %v179 = vpack.c.b16 %v172, %v171
    %v180 = vpack.c.b16 %v174, %v173
    %v181 = vpack.c.b16 %v176, %v175
    %v182 = vpack.c.b16 %v178, %v177
    %vm187 = vcmask 523264
    %v189 = vsel %vm187, %v147, 0
    %191 = vmatprep.subr.bf16.mxu0 0
    %192 = vmatpush1.bf16.msra.mxu0 %v179
    %193 = vmatprep.subr.bf16.mxu0 0
    %194 = vmatpush1.bf16.msra.mxu0 %v180
    %195 = vmatprep.subr.bf16.mxu0 0
    %196 = vmatpush1.bf16.msra.mxu0 %v181
    %197 = vmatprep.subr.bf16.mxu0 0
    %198 = vmatpush1.bf16.msra.mxu0 %v182
    %199 = vmatprep.subr.bf16.mxu0 0
    %200 = vmatpush1.bf16.msra.mxu0 0
    %201 = vmatprep.subr.bf16.mxu0 0
    %202 = vmatpush1.bf16.msra.mxu0 0
    %203 = vmatprep.subr.bf16.mxu0 0
    %204 = vmatpush1.bf16.msra.mxu0 0
    %205 = vmatprep.subr.bf16.mxu0 0
    %206 = vmatpush1.bf16.msra.mxu0 0
    %207 = vmatprep.subr.bf16.mxu0 0
    %208 = vmatpush1.bf16.msra.mxu0 0
    %209 = vmatprep.subr.bf16.mxu0 0
    %210 = vmatpush1.bf16.msra.mxu0 0
    %211 = vmatprep.subr.bf16.mxu0 0
    %212 = vmatpush1.bf16.msra.mxu0 0
    %213 = vmatprep.subr.bf16.mxu0 0
    %214 = vmatpush1.bf16.msra.mxu0 0
    %215 = vmatprep.subr.bf16.mxu0 0
    %216 = vmatpush1.bf16.msra.mxu0 0
    %217 = vmatprep.subr.bf16.mxu0 0
    %218 = vmatpush1.bf16.msra.mxu0 0
    %219 = vmatprep.subr.bf16.mxu0 0
    %220 = vmatpush1.bf16.msra.mxu0 0
    %221 = vmatprep.subr.bf16.mxu0 0
    %222 = vmatpush1.bf16.msra.mxu0 0
    %223 = vmatprep.mubr.bf16.mxu0 0
    %224 = vmatmul.mubr.bf16.gmra.mrb[0].mxu0 %v189
    %v225 = vpop.f32.mrb[0].mxu0
    %v226 = vadd.f32 %v161, %v225
    %v227 = vpop.f32.mrb[0].mxu0
    %v228 = vpop.f32.mrb[0].mxu0
    %v229 = vadd.f32 %v161, %v228
    %v230 = vpop.f32.mrb[0].mxu0
    %231 = vdwg.mxu0
    %v232 = vmax.f32 %v226, 0.0
    %v233 = vmax.f32 %v229, 0.0
    %v234 = vld [vmem:[%s5] sm:$0x1]
    %v236 = vlaneseq
    %v237 = vshrl.u32 %v236, 7
    %v238 = vsub.s32 0, %v237
    %v239 = vrot.slane %v234, %v238
    %v241 = vmul.f32 %v232, %v239
    %v242 = vmul.f32 %v233, %v239
    %v243 = vsel %vm187, %v241, 0.0
    %244 = vadd.xlane.f32.xlu0 %v243
    %v245 = vpop.xlane.xlu0 %244
    %v246 = vsel %vm187, %v242, 0.0
    %247 = vadd.xlane.f32.xlu0 %v246
    %v248 = vpop.xlane.xlu0 %247
    %v249 = vld [vmem:[#allocation2] sm:$0x1]
    %v251 = vlaneseq
    %v252 = vshrl.u32 %v251, 7
    %v253 = vsub.s32 0, %v252
    %v254 = vrot.slane %v249, %v253
    %v256 = vadd.f32 %v245, %v254
    %v257 = vadd.f32 %v248, %v254
    %vm258 = vcmask 7168
    %259 = vst.msk [vmem:[%s7] sm:$0xff] %vm258, %v256
    %260 = vst.msk [vmem:[%s7 + $0x8] sm:$0xff] %vm258, %v257
    // Predicated region
    $region42: #{tpu_custom_call.1} parent=1 // pred_check
      _
    $region43: #{tpu_custom_call.1} parent=1 // pred_check_branch
      %262 = sbr.rel (0) target = $region45
    $region44: #{tpu_custom_call.1} parent=1 // pred_region
      _
    $region45: #{tpu_custom_call.1} parent=1 // pred_fallthru
      _
    // Predicated region
    $region46: #{tpu_custom_call.1} parent=1 // pred_check
      _
    $region47: #{tpu_custom_call.1} parent=1 // pred_check_branch
      %264 = sbr.rel (0) target = $region49
    $region48: #{tpu_custom_call.1} parent=1 // pred_region
      _
    $region49: #{tpu_custom_call.1} parent=1 // pred_fallthru
      _
    %265 = vsyncpa [#allocation4], 1
    %266 = vsyncpa [#allocation6], 1

</llo_original>
